<compile_context>
chip_gen: v7x
topology: tpu7x:2x2x1
jax: 0.10.0
libtpu: 0.0.40
codegen_flags: <defaults>
</compile_context>

<pallas_src>
import math

import jax
import jax.numpy as jnp
from jax.experimental import pallas as pl
from jax.experimental.pallas import tpu as pltpu


_LANE = 128
_EPS = 1e-12
_CLIP = 1e-4
_NLL_LO = -math.log(1.0 - _CLIP + _EPS)   # min of -log(p) after clip: ~1.00005e-4
_NLL_HI = -math.log(_CLIP + _EPS)         # max of -log(p) after clip: ~9.2103
_PAD_LOGIT = -40.0                        # neutral pad logit (focal ~1e-12/elem, pos=0)
_MIB = 1 << 20


def _cdiv(a, b):
    return -(-a // b)


def _round_up(a, b):
    return _cdiv(a, b) * b


# ----------------------------------------------------------------------------
# Heatmap kernel: clip_sigmoid + Gaussian focal loss, lane-dense tiles,
# vector partial sums accumulated in the resident (8, 128) output blocks.
# ----------------------------------------------------------------------------
def _make_heatmap_kernel(rows, tile_r, grid_r, needs_mask):
    def kernel(pred_ref, gt_ref, loss_ref, pos_ref):
        r = pl.program_id(1)

        @pl.when(r == 0)
        def _init():
            loss_ref[...] = jnp.zeros_like(loss_ref)
            pos_ref[...] = jnp.zeros_like(pos_ref)

        x = pred_ref[...].astype(jnp.float32)
        gt = gt_ref[...].astype(jnp.float32)

        # Shared-softplus focal terms (2 exp + 1 log on the EUP, no f32 divide):
        #   sp_neg = softplus(-x) = -log(sigmoid(x))
        #   sp_pos = softplus( x) = -log(1 - sigmoid(x))
        # clip_sigmoid is applied in NLL space; p recovered with one extra exp.
        e = jnp.exp(-jnp.abs(x))
        sp_neg = jnp.maximum(-x, 0.0) + jnp.log(1.0 + e)
        sp_pos = x + sp_neg
        pos_nll = jnp.clip(sp_neg, _NLL_LO, _NLL_HI)   # -log(clip_sigmoid(x))
        neg_nll = jnp.clip(sp_pos, _NLL_LO, _NLL_HI)   # -log(1 - clip_sigmoid(x))
        p = jnp.exp(-pos_nll)                          # clipped sigmoid via EUP

        pos_w = (gt == 1.0).astype(jnp.float32)
        omg = 1.0 - gt
        neg_w = (omg * omg) * (omg * omg)              # (1 - gt)^4
        omp = 1.0 - p
        focal = pos_nll * (omp * omp) * pos_w + neg_nll * (p * p) * neg_w

        if needs_mask:
            # Partial last block: mask rows past the real array end via select,
            # so OOB garbage (NaN/Inf) cannot poison the sums.
            row0 = (pl.program_id(0) * grid_r + r) * tile_r
            local = jax.lax.broadcasted_iota(jnp.int32, focal.shape, 0)
            valid = (local + row0) < rows
            focal = jnp.where(valid, focal, 0.0)
            pos_w = jnp.where(valid, pos_w, 0.0)

        loss_ref[...] += jnp.sum(focal.reshape(tile_r // 8, 8, _LANE), axis=0)
        pos_ref[...] += jnp.sum(pos_w.reshape(tile_r // 8, 8, _LANE), axis=0)

    return kernel


def heatmap_loss(pred_logits, gt):
    """clip_sigmoid + GaussianFocalLoss(alpha=2, gamma=4), / max(num_pos, 1)."""
    assert pred_logits.shape == gt.shape
    n = 1
    for d in pred_logits.shape:
        n *= int(d)

    pred_flat = pred_logits.reshape(-1)
    gt_flat = gt.reshape(-1)
    n_pad = _round_up(n, 8 * _LANE)
    if n_pad != n:
        # Only when the total element count is not a multiple of 1024; real
        # CenterPoint heatmaps (H*W a multiple of 128) never hit this copy.
        # TODO(synk): handle the <1024-elem ragged tail in a separate tiny call
        # to avoid the pad copy entirely for odd shapes.
        pred_flat = jnp.pad(pred_flat, (0, n_pad - n), constant_values=_PAD_LOGIT)
        gt_flat = jnp.pad(gt_flat, (0, n_pad - n), constant_values=0.0)
    rows = n_pad // _LANE
    pred2 = pred_flat.reshape(rows, _LANE)     # lane-dense, native dtype (bf16 ok)
    gt2 = gt_flat.reshape(rows, _LANE)

    tile_r = min(4096, rows)                   # 2-8 MiB blocks amortize grid overhead
    n_blocks = _cdiv(rows, tile_r)
    num_par = 2 if (n_blocks >= 2 and n_blocks % 2 == 0) else 1
    grid_r = n_blocks // num_par
    needs_mask = (n_blocks * tile_r != rows)   # only the last block can be partial

    in_bytes = 2 * tile_r * _LANE * (pred2.dtype.itemsize + gt2.dtype.itemsize)
    vmem_limit = int(min(32 * _MIB, max(16 * _MIB, 2 * in_bytes)))

    kernel = _make_heatmap_kernel(rows, tile_r, grid_r, needs_mask)
    loss_vec, pos_vec = pl.pallas_call(
        kernel,
        out_shape=(jax.ShapeDtypeStruct((num_par * 8, _LANE), jnp.float32),
                   jax.ShapeDtypeStruct((num_par * 8, _LANE), jnp.float32)),
        grid=(num_par, grid_r),
        in_specs=[
            pl.BlockSpec((tile_r, _LANE), lambda p, r: (p * grid_r + r, 0)),
            pl.BlockSpec((tile_r, _LANE), lambda p, r: (p * grid_r + r, 0)),
        ],
        out_specs=(
            pl.BlockSpec((8, _LANE), lambda p, r: (p, 0)),
            pl.BlockSpec((8, _LANE), lambda p, r: (p, 0)),
        ),
        compiler_params=pltpu.CompilerParams(
            dimension_semantics=("parallel", "arbitrary"),
            vmem_limit_bytes=vmem_limit,
        ),
        cost_estimate=pl.CostEstimate(
            flops=int(24 * rows * _LANE),
            transcendentals=int(3 * rows * _LANE),
            bytes_accessed=int(rows * _LANE
                               * (pred2.dtype.itemsize + gt2.dtype.itemsize)),
        ),
    )(pred2, gt2)

    total = jnp.sum(loss_vec)
    num_pos = jnp.sum(pos_vec)
    return total / jnp.maximum(num_pos, 1.0)


# ----------------------------------------------------------------------------
# BBox kernel: native [B, C, H*W] layout, vectorized one-hot MXU gather
# accumulated over H*W tiles, masked L1 at the last tile, per-batch partials.
# ----------------------------------------------------------------------------
def _bbox_l1_kernel(ind_ref, pred_ref, target_ref, mask_ref, cw_ref,
                    loss_ref, gathered_ref):
    t = pl.program_id(1)
    tile_hw = pred_ref.shape[2]
    max_obj = gathered_ref.shape[1]

    @pl.when(t == 0)
    def _init():
        gathered_ref[...] = jnp.zeros_like(gathered_ref)

    # _gather_feat via one-hot matmul on the MXU: gathered[c, j] = pred[c, ind[j]].
    # Fully vectorized (no serial per-object loop); padded / out-of-range indices
    # simply never match and gather zeros (their weight is zero anyway).
    ind_row = ind_ref[0]                                           # (1, max_obj) int32
    cols = (jax.lax.broadcasted_iota(jnp.int32, (tile_hw, max_obj), 0)
            + t * tile_hw)
    onehot = (cols == ind_row).astype(pred_ref.dtype)              # (tile_hw, max_obj)
    gathered_ref[...] += jnp.dot(pred_ref[0], onehot,
                                 preferred_element_type=jnp.float32)

    @pl.when(t == pl.num_programs(1) - 1)
    def _finish():
        g = gathered_ref[...]                                      # (C, max_obj) f32
        tgt = target_ref[0].astype(jnp.float32)                    # (C, max_obj)
        m = mask_ref[0].astype(jnp.float32)                        # (1, max_obj)
        notnan = jnp.logical_not(jnp.isnan(tgt))
        t_safe = jnp.where(notnan, tgt, 0.0)                       # avoid 0*NaN
        w = m * notnan.astype(jnp.float32) * cw_ref[...]           # bbox_weights
        loss_ref[0, 0, 0] = jnp.sum(jnp.abs(g - t_safe) * w)


def bbox_loss(pred_cf, target, ind, mask, code_weights):
    """Weighted L1 over gathered predictions; pred_cf is channels-first [B, C, H*W]."""
    B, C, HW = pred_cf.shape
    _, max_obj, C2 = target.shape
    assert C2 == C

    target_t = jnp.transpose(target, (0, 2, 1))            # (B, C, max_obj) — tiny
    mask_f = mask.astype(jnp.float32).reshape(B, 1, max_obj)
    cw = jnp.asarray(code_weights, jnp.float32).reshape(C, 1)
    ind3 = ind.astype(jnp.int32).reshape(B, 1, max_obj)

    tile_hw = HW
    if HW > 8192:
        for cand in (8192, 4096, 2048, 1024, 512, 256, 128):
            if HW % cand == 0:
                tile_hw = cand
                break
    n_t = HW // tile_hw

    c_pad = _round_up(C, 8)
    pred_bytes = 2 * c_pad * tile_hw * pred_cf.dtype.itemsize     # double-buffered block
    vmem_limit = int(min(32 * _MIB, max(16 * _MIB, 4 * pred_bytes)))

    partials = pl.pallas_call(
        _bbox_l1_kernel,
        out_shape=jax.ShapeDtypeStruct((B, 1, 1), jnp.float32),
        grid=(B, n_t),
        in_specs=[
            pl.BlockSpec((1, 1, max_obj), lambda b, t: (b, 0, 0)),   # ind
            pl.BlockSpec((1, C, tile_hw), lambda b, t: (b, 0, t)),   # pred (native layout)
            pl.BlockSpec((1, C, max_obj), lambda b, t: (b, 0, 0)),   # target^T
            pl.BlockSpec((1, 1, max_obj), lambda b, t: (b, 0, 0)),   # mask
            pl.BlockSpec((C, 1), lambda b, t: (0, 0)),               # code_weights
        ],
        out_specs=pl.BlockSpec((1, 1, 1), lambda b, t: (b, 0, 0),
                               memory_space=pltpu.MemorySpace.SMEM),
        scratch_shapes=[pltpu.VMEM((C, max_obj), jnp.float32)],
        compiler_params=pltpu.CompilerParams(
            dimension_semantics=("parallel", "arbitrary"),
            vmem_limit_bytes=vmem_limit,
        ),
    )(ind3, pred_cf, target_t, mask_f, cw)

    num = jnp.sum(mask.astype(jnp.float32))
    loss = jnp.sum(partials) / (num + 0.0001)
    return loss, num


# ----------------------------------------------------------------------------
# CenterPointLoss forward (glue is plain JAX, hot paths run in Pallas kernels)
# ----------------------------------------------------------------------------
class CenterPointLossPallas:
    def __init__(self, with_velocity=False, code_weights=None):
        self.with_velocity = with_velocity
        self.code_weights = jnp.asarray(code_weights, jnp.float32)

    def __call__(self, heatmaps, anno_boxes, inds, masks, preds_dicts):
        loss_dict = {}
        keys = ["reg", "height", "dim", "rot"]
        if self.with_velocity:
            keys = keys + ["vel"]
        for task_id, preds_dict in enumerate(preds_dicts):
            loss_heatmap = heatmap_loss(preds_dict["heatmap"],
                                        heatmaps[task_id])
            # Native channels-first layout: only a channel concat (plain copy),
            # no NCHW->NHWC transpose/relayout pass; the gather runs in-kernel.
            # TODO(synk): gather per-head inside the kernel to drop the concat too.
            anno_box = jnp.concatenate([preds_dict[k] for k in keys], axis=1)
            B, C, H, W = anno_box.shape
            pred_cf = anno_box.reshape(B, C, H * W)
            lb, _ = bbox_loss(pred_cf, anno_boxes[task_id], inds[task_id],
                              masks[task_id], self.code_weights)
            loss_dict[f"task{task_id}.loss_heatmap"] = loss_heatmap
            loss_dict[f"task{task_id}.loss_bbox"] = lb
        return loss_dict


# ----------------------------------------------------------------------------
# Pure-JAX reference (same math) for a correctness check.
# ----------------------------------------------------------------------------
def reference_loss(heatmaps, anno_boxes, inds, masks, preds_dicts,
                   code_weights, with_velocity=False):
    out = {}
    keys = ["reg", "height", "dim", "rot"]
    if with_velocity:
        keys = keys + ["vel"]
    for tid, pd in enumerate(preds_dicts):
        p = jnp.clip(jax.nn.sigmoid(pd["heatmap"]), 1e-4, 1.0 - 1e-4)
        gt = heatmaps[tid]
        pos_w = (gt == 1.0).astype(jnp.float32)
        neg_w = (1.0 - gt) ** 4
        pos_loss = -jnp.log(p + 1e-12) * (1.0 - p) ** 2 * pos_w
        neg_loss = -jnp.log(1.0 - p + 1e-12) * p ** 2 * neg_w
        out[f"task{tid}.loss_heatmap"] = (
            jnp.sum(pos_loss + neg_loss) / jnp.maximum(jnp.sum(pos_w), 1.0))

        ab = jnp.concatenate([pd[k] for k in keys], axis=1)
        B, C, H, W = ab.shape
        pf = ab.transpose(0, 2, 3, 1).reshape(B, H * W, C)
        gathered = jnp.take_along_axis(
            pf, inds[tid][:, :, None].astype(jnp.int32), axis=1)
        t = anno_boxes[tid]
        m = (masks[tid].astype(jnp.float32)[:, :, None]
             * (~jnp.isnan(t)).astype(jnp.float32) * code_weights)
        num = masks[tid].astype(jnp.float32).sum()
        out[f"task{tid}.loss_bbox"] = (
            jnp.sum(jnp.abs(gathered - t) * m) / (num + 0.0001))
    return out


if __name__ == "__main__":
    key = jax.random.PRNGKey(0)
    B, H, W, MAX_OBJ = 2, 16, 16, 8
    CODE_DIM = 8  # with_velocity=False: reg(2)+height(1)+dim(3)+rot(2)
    task_num_classes = [1, 2]
    code_weights = [1.0, 1.0, 1.0, 1.0, 1.0, 1.0, 0.5, 0.5]

    heatmaps, anno_boxes, inds, masks, preds_dicts = [], [], [], [], []
    for num_cls in task_num_classes:
        key, k1, k2, k3, k4, k5, k6, k7, k8 = jax.random.split(key, 9)
        # Ground-truth heatmap in [0, 0.9) with a few exact-1.0 positives.
        gt = jax.random.uniform(k1, (B, num_cls, H, W), jnp.float32) * 0.9
        gt = gt.at[:, :, 4, 4].set(1.0)
        gt = gt.at[:, :, 9, 11].set(1.0)
        heatmaps.append(gt)

        anno_boxes.append(
            jax.random.normal(k2, (B, MAX_OBJ, CODE_DIM), jnp.float32))
        inds.append(
            jax.random.randint(k3, (B, MAX_OBJ), 0, H * W, jnp.int32))
        counts = jnp.array([5, 3], jnp.int32)
        masks.append(jnp.arange(MAX_OBJ)[None, :] < counts[:, None])

        preds_dicts.append({
            "heatmap": jax.random.normal(k4, (B, num_cls, H, W), jnp.float32),
            "reg": jax.random.normal(k5, (B, 2, H, W), jnp.float32),
            "height": jax.random.normal(k6, (B, 1, H, W), jnp.float32),
            "dim": jax.random.normal(k7, (B, 3, H, W), jnp.float32),
            "rot": jax.random.normal(k8, (B, 2, H, W), jnp.float32),
        })

    loss_mod = CenterPointLossPallas(with_velocity=False,
                                     code_weights=code_weights)
    losses = loss_mod(heatmaps, anno_boxes, inds, masks, preds_dicts)
    losses = jax.tree_util.tree_map(jax.block_until_ready, losses)

    ref = reference_loss(heatmaps, anno_boxes, inds, masks, preds_dicts,
                         jnp.asarray(code_weights, jnp.float32),
                         with_velocity=False)
    for name in sorted(losses):
        a = float(losses[name])
        b = float(ref[name])
        assert abs(a - b) <= 1e-3 * (1.0 + abs(b)), (name, a, b)

    print("KERNEL_OK")
</pallas_src>

<mosaic_0001>
module attributes {stable_mosaic.version = 11 : i64} {
  func.func @kernel(%arg0: i32, %arg1: i32, %arg2: memref<8x128xf32, #tpu.memory_space<vmem>>, %arg3: memref<8x128xf32, #tpu.memory_space<vmem>>, %arg4: memref<8x128xf32, #tpu.memory_space<vmem>>, %arg5: memref<8x128xf32, #tpu.memory_space<vmem>>) attributes {dimension_semantics = [#tpu.dimension_semantics<parallel>, #tpu.dimension_semantics<arbitrary>], iteration_bounds = array<i64: 1, 1>, scalar_prefetch = 0 : i64, scratch_operands = 0 : i64, tpu.core_type = #tpu.core_type<tc>, window_params = [{transform_indices = @transform_0, window_bounds = array<i64: 8, 128>}, {transform_indices = @transform_1, window_bounds = array<i64: 8, 128>}, {transform_indices = @transform_2, window_bounds = array<i64: 8, 128>}, {transform_indices = @transform_3, window_bounds = array<i64: 8, 128>}]} {
    %c0_i32 = arith.constant 0 : i32
    %0 = arith.cmpi eq, %arg1, %c0_i32 : i32
    %1 = arith.extui %0 : i1 to i32
    %c0_i32_0 = arith.constant 0 : i32
    %2 = arith.cmpi ne, %1, %c0_i32_0 : i32
    scf.if %2 {
      %cst_25 = arith.constant 0.000000e+00 : f32
      %57 = vector.broadcast %cst_25 : f32 to vector<8x128xf32>
      %c0_26 = arith.constant 0 : index
      %c0_27 = arith.constant 0 : index
      %58 = vector.load %arg4[%c0_26, %c0_27] : memref<8x128xf32, #tpu.memory_space<vmem>>, vector<8x128xf32>
      tpu.vector_store %arg4[%c0_26, %c0_27], %57 {strides = array<i32>} : memref<8x128xf32, #tpu.memory_space<vmem>>, vector<8x128xf32>,
      %cst_28 = arith.constant 0.000000e+00 : f32
      %59 = vector.broadcast %cst_28 : f32 to vector<8x128xf32>
      %c0_29 = arith.constant 0 : index
      %c0_30 = arith.constant 0 : index
      %60 = vector.load %arg5[%c0_29, %c0_30] : memref<8x128xf32, #tpu.memory_space<vmem>>, vector<8x128xf32>
      tpu.vector_store %arg5[%c0_29, %c0_30], %59 {strides = array<i32>} : memref<8x128xf32, #tpu.memory_space<vmem>>, vector<8x128xf32>,
    } else {
    }
    %c0 = arith.constant 0 : index
    %c0_1 = arith.constant 0 : index
    %3 = vector.load %arg2[%c0, %c0_1] : memref<8x128xf32, #tpu.memory_space<vmem>>, vector<8x128xf32>
    %c0_2 = arith.constant 0 : index
    %c0_3 = arith.constant 0 : index
    %4 = vector.load %arg3[%c0_2, %c0_3] : memref<8x128xf32, #tpu.memory_space<vmem>>, vector<8x128xf32>
    %5 = math.absf %3 : vector<8x128xf32>
    %cst = arith.constant 0.000000e+00 : f32
    %6 = vector.broadcast %cst : f32 to vector<8x128xf32>
    %7 = arith.subf %6, %5 : vector<8x128xf32>
    %8 = math.exp %7 : vector<8x128xf32>
    %cst_4 = arith.constant 0.000000e+00 : f32
    %9 = vector.broadcast %cst_4 : f32 to vector<8x128xf32>
    %10 = arith.subf %9, %3 : vector<8x128xf32>
    %cst_5 = arith.constant 0.000000e+00 : f32
    %11 = vector.broadcast %cst_5 : f32 to vector<8x128xf32>
    %12 = arith.maximumf %10, %11 : vector<8x128xf32>
    %cst_6 = arith.constant 1.000000e+00 : f32
    %13 = vector.broadcast %cst_6 : f32 to vector<8x128xf32>
    %14 = arith.addf %13, %8 : vector<8x128xf32>
    %15 = math.log %14 : vector<8x128xf32>
    %16 = arith.addf %12, %15 : vector<8x128xf32>
    %17 = arith.addf %3, %16 : vector<8x128xf32>
    %cst_7 = arith.constant 1.00004996E-4 : f32
    %cst_8 = arith.constant 9.21034049 : f32
    %18 = vector.broadcast %cst_7 : f32 to vector<8x128xf32>
    %19 = arith.maximumf %18, %16 : vector<8x128xf32>
    %20 = vector.broadcast %cst_8 : f32 to vector<8x128xf32>
    %21 = arith.minimumf %20, %19 : vector<8x128xf32>
    %cst_9 = arith.constant 1.00004996E-4 : f32
    %cst_10 = arith.constant 9.21034049 : f32
    %22 = vector.broadcast %cst_9 : f32 to vector<8x128xf32>
    %23 = arith.maximumf %22, %17 : vector<8x128xf32>
    %24 = vector.broadcast %cst_10 : f32 to vector<8x128xf32>
    %25 = arith.minimumf %24, %23 : vector<8x128xf32>
    %cst_11 = arith.constant 0.000000e+00 : f32
    %26 = vector.broadcast %cst_11 : f32 to vector<8x128xf32>
    %27 = arith.subf %26, %21 : vector<8x128xf32>
    %28 = math.exp %27 : vector<8x128xf32>
    %cst_12 = arith.constant 1.000000e+00 : f32
    %29 = vector.broadcast %cst_12 : f32 to vector<8x128xf32>
    %30 = arith.cmpf oeq, %4, %29 : vector<8x128xf32>
    %31 = arith.extui %30 : vector<8x128xi1> to vector<8x128xi32>
    %32 = arith.sitofp %31 : vector<8x128xi32> to vector<8x128xf32>
    %cst_13 = arith.constant 1.000000e+00 : f32
    %33 = vector.broadcast %cst_13 : f32 to vector<8x128xf32>
    %34 = arith.subf %33, %4 : vector<8x128xf32>
    %35 = arith.mulf %34, %34 : vector<8x128xf32>
    %36 = arith.mulf %34, %34 : vector<8x128xf32>
    %37 = arith.mulf %35, %36 : vector<8x128xf32>
    %cst_14 = arith.constant 1.000000e+00 : f32
    %38 = vector.broadcast %cst_14 : f32 to vector<8x128xf32>
    %39 = arith.subf %38, %28 : vector<8x128xf32>
    %40 = arith.mulf %39, %39 : vector<8x128xf32>
    %41 = arith.mulf %21, %40 : vector<8x128xf32>
    %42 = arith.mulf %41, %32 : vector<8x128xf32>
    %43 = arith.mulf %28, %28 : vector<8x128xf32>
    %44 = arith.mulf %25, %43 : vector<8x128xf32>
    %45 = arith.mulf %44, %37 : vector<8x128xf32>
    %46 = arith.addf %42, %45 : vector<8x128xf32>
    %c0_15 = arith.constant 0 : index
    %c0_16 = arith.constant 0 : index
    %47 = vector.load %arg4[%c0_15, %c0_16] : memref<8x128xf32, #tpu.memory_space<vmem>>, vector<8x128xf32>
    %48 = vector.shape_cast %46 : vector<8x128xf32> to vector<1x8x128xf32>
    %cst_17 = arith.constant dense<0.000000e+00> : vector<8x128xf32>
    %49 = vector.multi_reduction <add>, %48, %cst_17 [0] : vector<1x8x128xf32> to vector<8x128xf32>
    %50 = arith.addf %47, %49 : vector<8x128xf32>
    %c0_18 = arith.constant 0 : index
    %c0_19 = arith.constant 0 : index
    %51 = vector.load %arg4[%c0_18, %c0_19] : memref<8x128xf32, #tpu.memory_space<vmem>>, vector<8x128xf32>
    tpu.vector_store %arg4[%c0_18, %c0_19], %50 {strides = array<i32>} : memref<8x128xf32, #tpu.memory_space<vmem>>, vector<8x128xf32>,
    %c0_20 = arith.constant 0 : index
    %c0_21 = arith.constant 0 : index
    %52 = vector.load %arg5[%c0_20, %c0_21] : memref<8x128xf32, #tpu.memory_space<vmem>>, vector<8x128xf32>
    %53 = vector.shape_cast %32 : vector<8x128xf32> to vector<1x8x128xf32>
    %cst_22 = arith.constant dense<0.000000e+00> : vector<8x128xf32>
    %54 = vector.multi_reduction <add>, %53, %cst_22 [0] : vector<1x8x128xf32> to vector<8x128xf32>
    %55 = arith.addf %52, %54 : vector<8x128xf32>
    %c0_23 = arith.constant 0 : index
    %c0_24 = arith.constant 0 : index
    %56 = vector.load %arg5[%c0_23, %c0_24] : memref<8x128xf32, #tpu.memory_space<vmem>>, vector<8x128xf32>
    tpu.vector_store %arg5[%c0_23, %c0_24], %55 {strides = array<i32>} : memref<8x128xf32, #tpu.memory_space<vmem>>, vector<8x128xf32>,
    return
  }
  func.func @transform_0(%arg0: i32, %arg1: i32) -> (i32, i32) {
    %c1_i32 = arith.constant 1 : i32
    %0 = arith.muli %arg0, %c1_i32 : i32
    %1 = arith.addi %0, %arg1 : i32
    %c0_i32 = arith.constant 0 : i32
    %c0_i32_0 = arith.constant 0 : i32
    return %1, %c0_i32 : i32, i32
  }
  func.func @transform_1(%arg0: i32, %arg1: i32) -> (i32, i32) {
    %c1_i32 = arith.constant 1 : i32
    %0 = arith.muli %arg0, %c1_i32 : i32
    %1 = arith.addi %0, %arg1 : i32
    %c0_i32 = arith.constant 0 : i32
    %c0_i32_0 = arith.constant 0 : i32
    return %1, %c0_i32 : i32, i32
  }
  func.func @transform_2(%arg0: i32, %arg1: i32) -> (i32, i32) {
    %c0_i32 = arith.constant 0 : i32
    %c0_i32_0 = arith.constant 0 : i32
    return %arg0, %c0_i32 : i32, i32
  }
  func.func @transform_3(%arg0: i32, %arg1: i32) -> (i32, i32) {
    %c0_i32 = arith.constant 0 : i32
    %c0_i32_0 = arith.constant 0 : i32
    return %arg0, %c0_i32 : i32, i32
  }
}

</mosaic_0001>

<llo_original>
// kernel: tpu_custom_call.1
$region0: #{tpu_custom_call.1}
  #allocation0 [shape = 'u32[]', space=smem, size = 0x4, offset = 0x4, fixed_abs, tag = 'smem constant byte address 0x4 - core index']
  #allocation1 [shape = 'u32[144,128]{1,0:T(1,128)}', space=vmem, size = 0x12000, scoped, tag = 'internal scratch']
  %s0 = inlined_call_operand.hbm [shape: f32[8,128], index: 0, kind: input, shape index: {}]
  %s1 = inlined_call_operand.hbm [shape: f32[8,128], index: 1, kind: input, shape index: {}]
  %s2 = inlined_call_operand.hbm [shape: f32[8,128], index: 2, kind: output, shape index: {0}]
  %s3 = inlined_call_operand.hbm [shape: f32[8,128], index: 3, kind: output, shape index: {1}]
  %4 = xla_tuple %s2, %s3
  %s5 = sld [smem:[#allocation0]]
  $region38: #{tpu_custom_call.1} parent=0
    _
  %s7 = ssub.s32 1, %s5
  %s8 = scalar_select 0, %s7, %s5
  $region1: #{tpu_custom_call.1} parent=0
    #allocation2 [shape = 'u8[4096]{0}', space=vmem, size = 0x1000, scoped, tag = 'input window, operand 0, single buffered']
    #allocation3 [shape = 's32[1]{0}', space=sflag, size = 0x4, scoped, tag = 'scoped memory for tpu_custom_call.1']
    #allocation4 [shape = 's32[1]{0}', space=sflag, size = 0x4, scoped, tag = 'scoped memory for tpu_custom_call.1']
    #allocation5 [shape = 'u8[4096]{0}', space=vmem, size = 0x1000, scoped, tag = 'input window, operand 1, single buffered']
    #allocation6 [shape = 's32[1]{0}', space=sflag, size = 0x4, scoped, tag = 'scoped memory for tpu_custom_call.1']
    #allocation7 [shape = 'u8[4096]{0}', space=vmem, size = 0x1000, scoped, tag = 'output window, operand 0, single buffered']
    #allocation8 [shape = 'u8[4096]{0}', space=vmem, size = 0x1000, scoped, tag = 'output window, operand 1, single buffered']
    #allocation9 [shape = 's32[1]{0}', space=sflag, size = 0x4, scoped, tag = 'scoped memory for tpu_custom_call.1']
    %9 = vsyncpa [#allocation3], 0
    %10 = vsyncpa [#allocation6], 0
    %11 = vsyncpa [#allocation4], 0
    %12 = vsyncpa [#allocation9], 0
    // Predicated region
    $region2: #{tpu_custom_call.1} parent=1 // pred_check
      _
    $region3: #{tpu_custom_call.1} parent=1 // pred_check_branch
      %14 = sbr.rel (0) target = $region5
    $region4: #{tpu_custom_call.1} parent=1 // pred_region
      %s15 = sadd.s32 0, 0
      %s17 = ssub.s32 128, 128
      %18 = vsyncadd [#allocation3], %s17
      %s19 = smul.addr %s15, 128
      %s20 = scalar_lea.hbm %s0, %s19
      %s22 = sshll.u32 [#allocation2], 4
      %s23 = int_to_ptr.vmem [resolvable:$true] %s22
      %25 = dma.hbm_to_vmem [thread:$0]  %s20, 128, %s23, [#allocation3]
    $region5: #{tpu_custom_call.1} parent=1 // pred_fallthru
      _
    // Predicated region
    $region6: #{tpu_custom_call.1} parent=1 // pred_check
      _
    $region7: #{tpu_custom_call.1} parent=1 // pred_check_branch
      %27 = sbr.rel (0) target = $region9
    $region8: #{tpu_custom_call.1} parent=1 // pred_region
      %s28 = sadd.s32 0, 0
      %s30 = ssub.s32 128, 128
      %31 = vsyncadd [#allocation6], %s30
      %s32 = smul.addr %s28, 128
      %s33 = scalar_lea.hbm %s1, %s32
      %s35 = sshll.u32 [#allocation5], 4
      %s36 = int_to_ptr.vmem [resolvable:$true] %s35
      %38 = dma.hbm_to_vmem [thread:$0]  %s33, 128, %s36, [#allocation6]
    $region9: #{tpu_custom_call.1} parent=1 // pred_fallthru
      _
    // Predicated region
    $region10: #{tpu_custom_call.1} parent=1 // pred_check
      _
    $region11: #{tpu_custom_call.1} parent=1 // pred_check_branch
      %40 = sbr.rel (0) target = $region13
    $region12: #{tpu_custom_call.1} parent=1 // pred_region
      %41 = dma.done [#allocation3], 128
    $region13: #{tpu_custom_call.1} parent=1 // pred_fallthru
      _
    // Predicated region
    $region14: #{tpu_custom_call.1} parent=1 // pred_check
      _
    $region15: #{tpu_custom_call.1} parent=1 // pred_check_branch
      %43 = sbr.rel (0) target = $region17
    $region16: #{tpu_custom_call.1} parent=1 // pred_region
      %44 = dma.done [#allocation6], 128
    $region17: #{tpu_custom_call.1} parent=1 // pred_fallthru
      _
    %s45 = sadd.s32 0, 0
    %s46 = sadd.s32 0, 0
    %p47 = scmp.eq.s32.totalorder 0, 0
    // Predicated region
    $region18: #{tpu_custom_call.1} parent=1 // pred_check
      %p48 = pneg %p47
    $region19: #{tpu_custom_call.1} parent=1 // pred_check_branch
      %50 = sbr.rel (%p48) target = $region21
    $region20: #{tpu_custom_call.1} parent=1 // pred_region
      %51 = vst [vmem:[#allocation7] sm:$0xff] 0.0
      %52 = vst [vmem:[#allocation8] sm:$0xff] 0.0
    $region21: #{tpu_custom_call.1} parent=1 // pred_fallthru
      _
    %v53 = vld [vmem:[#allocation2] sm:$0xff]
    %v54 = vld [vmem:[#allocation5] sm:$0xff]
    %v55 = vand.u32 2147483647, %v53
    %v56 = vsub.f32 0.0, %v55
    %v57 = vmul.f32 %v56, 1.442695
    %v58 = vpow.pop %v57
    %v59 = vsub.f32 0.0, %v53
    %v60 = vmax.f32 %v59, 0.0
    %v61 = vadd.f32 %v58, 1.0
    %v62 = vlog2.pop %v61
    %v63 = vmul.f32 %v62, 0.6931472
    %v64 = vadd.f32 %v60, %v63
    %v65 = vadd.f32 %v53, %v64
    %v66 = vmax.f32 %v64, 0.000100004996
    %v67 = vmin.f32 %v66, 9.2103405
    %v68 = vmax.f32 %v65, 0.000100004996
    %v69 = vmin.f32 %v68, 9.2103405
    %v70 = vsub.f32 0.0, %v67
    %v71 = vmul.f32 %v70, 1.442695
    %v72 = vpow.pop %v71
    %vm73 = vcmp.eq.f32.partialorder %v54, 1.0
    %v74 = vsel %vm73, 1, 0
    %v75 = vcvt.s32.f32 %v74
    %v76 = vsub.f32 1.0, %v54
    %v77 = vmul.f32 %v76, %v76
    %v78 = vmul.f32 %v77, %v77
    %v79 = vsub.f32 1.0, %v72
    %v80 = vmul.f32 %v79, %v79
    %v81 = vmul.f32 %v67, %v80
    %v82 = vmul.f32 %v81, %v75
    %v83 = vmul.f32 %v72, %v72
    %v84 = vmul.f32 %v69, %v83
    %v85 = vmul.f32 %v84, %v78
    %v86 = vadd.f32 %v82, %v85
    %v87 = vld [vmem:[#allocation7] sm:$0xff]
    %v88 = vadd.f32 %v86, 0.0
    %v89 = vadd.f32 %v87, %v88
    %90 = vst [vmem:[#allocation7] sm:$0xff] %v89
    %v91 = vld [vmem:[#allocation8] sm:$0xff]
    %v92 = vadd.f32 %v75, 0.0
    %v93 = vadd.f32 %v91, %v92
    %94 = vst [vmem:[#allocation8] sm:$0xff] %v93
    // Predicated region
    $region22: #{tpu_custom_call.1} parent=1 // pred_check
      _
    $region23: #{tpu_custom_call.1} parent=1 // pred_check_branch
      %96 = sbr.rel (0) target = $region25
    $region24: #{tpu_custom_call.1} parent=1 // pred_region
      %s98 = ssub.s32 128, 128
      %99 = vsyncadd [#allocation4], %s98
      %s101 = sshll.u32 [#allocation7], 4
      %s102 = int_to_ptr.vmem [resolvable:$true] %s101
      %104 = dma.vmem_to_hbm [thread:$0]  %s102, 128, %s2, [#allocation4]
    $region25: #{tpu_custom_call.1} parent=1 // pred_fallthru
      _
    // Predicated region
    $region26: #{tpu_custom_call.1} parent=1 // pred_check
      _
    $region27: #{tpu_custom_call.1} parent=1 // pred_check_branch
      %106 = sbr.rel (0) target = $region29
    $region28: #{tpu_custom_call.1} parent=1 // pred_region
      %s108 = ssub.s32 128, 128
      %109 = vsyncadd [#allocation9], %s108
      %s111 = sshll.u32 [#allocation8], 4
      %s112 = int_to_ptr.vmem [resolvable:$true] %s111
      %114 = dma.vmem_to_hbm [thread:$0]  %s112, 128, %s3, [#allocation9]
    $region29: #{tpu_custom_call.1} parent=1 // pred_fallthru
      _
    // Predicated region
    $region30: #{tpu_custom_call.1} parent=1 // pred_check
      _
    $region31: #{tpu_custom_call.1} parent=1 // pred_check_branch
      %116 = sbr.rel (0) target = $region33
    $region32: #{tpu_custom_call.1} parent=1 // pred_region
      %117 = dma.done [#allocation4], 128
    $region33: #{tpu_custom_call.1} parent=1 // pred_fallthru
      _
    // Predicated region
    $region34: #{tpu_custom_call.1} parent=1 // pred_check
      _
    $region35: #{tpu_custom_call.1} parent=1 // pred_check_branch
      %119 = sbr.rel (0) target = $region37
    $region36: #{tpu_custom_call.1} parent=1 // pred_region
      %120 = dma.done [#allocation9], 128
    $region37: #{tpu_custom_call.1} parent=1 // pred_fallthru
      _
    %121 = vsyncpa [#allocation3], 1
    %122 = vsyncpa [#allocation6], 1
    %123 = vsyncpa [#allocation4], 1
    %124 = vsyncpa [#allocation9], 1

</llo_original>
